<compile_context>
chip_gen: v6e
topology: v6e:2x2x1
jax: 0.10.0
libtpu: 0.0.40
codegen_flags: <defaults>
</compile_context>

<pallas_src>
import functools
import math

import jax
import jax.numpy as jnp
from jax.experimental import pallas as pl
from jax.experimental.pallas import tpu as pltpu


_SUM_POOLS = ("mean", "sum", "adaptive_avg_pool")    # mean == adaptive_avg_pool(out=1)
_NEG_INIT = float(jnp.finfo(jnp.float32).min)        # finite "-inf" (avoids inf-inf NaN)
_MiB = 1024 * 1024


# --------------------------------------------------------------------------- #
# Kernels
# --------------------------------------------------------------------------- #
def _predictor_kernel(x_ref, w_ref, b_ref, o_ref, acc_ref, *maybe_aux, pool):
    """One (batch-tile, L-tile) grid step of the pooled-linear Predictor.

    x_ref:   (TB, TL, D)     activations tile (any float dtype, upcast to f32)
    w_ref:   (D, O_pad)      pre-transposed / pre-scaled classifier weight
    b_ref:   (1, O_pad)      bias (zero-padded)
    o_ref:   (TB, O_pad)     output tile (written only on the last L step)
    acc_ref: (TB, 8, D) f32  per-sublane-slot running sum / max / sum-of-exp
    aux_ref: (TB, 8, D) f32  per-sublane-slot running max (softmax only)
    """
    aux_ref = maybe_aux[0] if maybe_aux else None
    li = pl.program_id(1)
    nl = pl.num_programs(1)
    TB, TL, D = x_ref.shape
    SL = acc_ref.shape[1]                      # 8; TL % SL == 0 by construction

    # ---- init accumulators on the first L tile ---------------------------
    @pl.when(li == 0)
    def _():
        if pool == "max":
            acc_ref[...] = jnp.full(acc_ref.shape, _NEG_INIT, acc_ref.dtype)
        else:
            acc_ref[...] = jnp.zeros_like(acc_ref)
        if pool == "softmax":
            aux_ref[...] = jnp.full(aux_ref.shape, _NEG_INIT, aux_ref.dtype)

    # (TB, TL, D) -> (TB, TL//8, 8, D): splits the sublane axis on its native
    # 8-row tile boundary, so reducing over axis=1 is pure vreg-to-vreg VALU
    # work; the single cross-sublane (XLU) collapse of the 8 slots happens once,
    # in the finalize step, not every streamed grid step.
    x = x_ref[...].astype(jnp.float32).reshape(TB, TL // SL, SL, D)

    # ---- streaming reduction over the sequence axis ----------------------
    if pool in _SUM_POOLS:
        # 1/L for 'mean'/'adaptive_avg_pool' is folded into w_ref (wrapper).
        acc_ref[...] += jnp.sum(x, axis=1)
    elif pool == "max":
        acc_ref[...] = jnp.maximum(acc_ref[...], jnp.max(x, axis=1))
    elif pool == "softmax":
        m_old = aux_ref[...]
        m_new = jnp.maximum(m_old, jnp.max(x, axis=1))            # (TB, 8, D)
        p = jnp.exp(x - m_new[:, None, :, :])                     # EUP
        acc_ref[...] = acc_ref[...] * jnp.exp(m_old - m_new) + jnp.sum(p, axis=1)
        aux_ref[...] = m_new
    else:
        raise ValueError(f"pool={pool!r} not handled by this kernel")

    # ---- finalize: collapse sublane slots, matmul + bias ------------------
    @pl.when(li == nl - 1)
    def _():
        if pool in _SUM_POOLS:
            pooled = jnp.sum(acc_ref[...], axis=1)                # (TB, D)
        elif pool == "max":
            pooled = jnp.max(acc_ref[...], axis=1)
        else:  # softmax: max over L of softmax == 1 / sum_l exp(x_l - max_l x)
            m = aux_ref[...]
            m_g = jnp.max(m, axis=1)                              # (TB, D)
            s_g = jnp.sum(acc_ref[...] * jnp.exp(m - m_g[:, None, :]), axis=1)
            pooled = pl.reciprocal(s_g, approx=False)
        out = jnp.dot(pooled, w_ref[...], preferred_element_type=jnp.float32)
        o_ref[...] = out + b_ref[...]


def _softmax_mean_kernel(w_ref, b_ref, o_ref):
    """pool='softmax_mean': pooled vector is exactly ones (1/L folded into W)."""
    ones = jnp.ones((o_ref.shape[0], w_ref.shape[0]), jnp.float32)
    o_ref[...] = (jnp.dot(ones, w_ref[...], preferred_element_type=jnp.float32)
                  + b_ref[...])


# --------------------------------------------------------------------------- #
# Tiling / budget helpers
# --------------------------------------------------------------------------- #
def _default_vmem_limit():
    """~3/4 of physical VMEM, clamped to [32, 96] MiB.
    v5e/v6e (128 MiB physical) -> 96 MiB; v7x (64 MiB per TensorCore) -> 48 MiB."""
    try:
        cap = pltpu.get_tpu_info().vmem_capacity_bytes
    except Exception:
        cap = 64 * _MiB
    return int(min(96 * _MiB, max(32 * _MiB, (cap * 3) // 4)))


def _pick_batch_tile(batch, cap):
    """Largest multiple-of-8 divisor of `batch` <= cap.  When batch >= 16,
    prefer a tile that leaves >= 2 batch tiles so the 'parallel' grid axis can
    shard across both TensorCores on v7x.  Falls back to the full batch."""
    cap = max(8, cap)
    divs = [d for d in range(8, min(batch, cap) + 1, 8) if batch % d == 0]
    if batch >= 16:
        split = [d for d in divs if batch // d >= 2]
        if split:
            return max(split)
    if divs:
        return max(divs)
    return batch        # full dim is always a legal block


def _pick_seq_tile(seq_len, cap, align):
    """Return (TL, pad): TL is a multiple of `align`; if no aligned divisor of
    seq_len fits under `cap`, the caller pads L by `pad` rows instead."""
    cap = max(align, (cap // align) * align)
    top = min(cap, (seq_len // align) * align)
    for cand in range(top, 0, -align):
        if seq_len % cand == 0:
            return cand, 0
    tl = min(cap, ((seq_len + align - 1) // align) * align)
    padded = ((seq_len + tl - 1) // tl) * tl
    return tl, padded - seq_len


# --------------------------------------------------------------------------- #
# Host-side wrappers
# --------------------------------------------------------------------------- #
def prepare_predictor_params(weight, bias, seq_len, *, pool="mean"):
    """One-time prep of the classifier params for the kernel:
      * transpose (O, D) -> (D, O)            (no per-call weight.T HBM traffic)
      * fold the 1/L mean scale into the weight
      * zero-pad the output dim up to a multiple of 128 (lane-dense stores)
    Returns (w_prepped (D, O_pad) f32, b_prepped (1, O_pad) f32, out_features).
    (For very large heads w_prepped could be kept in bf16; f32 here for parity
    with the PyTorch reference.)"""
    out_features, in_features = weight.shape
    o_pad = max(128, ((out_features + 127) // 128) * 128)
    scale = 1.0 / float(seq_len) if pool in ("mean", "adaptive_avg_pool",
                                             "softmax_mean") else 1.0
    w_t = (weight.astype(jnp.float32) * scale).T                      # (D, O)
    w_p = jnp.zeros((in_features, o_pad), jnp.float32).at[:, :out_features].set(w_t)
    b_p = jnp.zeros((1, o_pad), jnp.float32).at[0, :out_features].set(
        bias.astype(jnp.float32))
    return w_p, b_p, out_features


def _constant_pool_forward(batch, w_prepped, b_prepped, out_features,
                           vmem_limit_bytes):
    """softmax_mean short-circuit: result is independent of x1 (finite inputs)."""
    d_in, o_pad = w_prepped.shape
    tb = _pick_batch_tile(batch, 256)
    out = pl.pallas_call(
        _softmax_mean_kernel,
        out_shape=jax.ShapeDtypeStruct((batch, o_pad), jnp.float32),
        grid_spec=pltpu.PrefetchScalarGridSpec(
            num_scalar_prefetch=0,
            grid=(batch // tb,),
            in_specs=[pl.BlockSpec((d_in, o_pad), lambda b: (0, 0)),
                      pl.BlockSpec((1, o_pad), lambda b: (0, 0))],
            out_specs=pl.BlockSpec((tb, o_pad), lambda b: (b, 0)),
        ),
        compiler_params=pltpu.CompilerParams(
            dimension_semantics=("parallel",),
            vmem_limit_bytes=vmem_limit_bytes,
        ),
    )(w_prepped, b_prepped)
    return out[:, :out_features]


def predictor_forward(x1, w_prepped, b_prepped, out_features, *, pool="mean",
                      x_block_bytes=None, vmem_limit_bytes=None):
    """use='seq' path of Predictor: pool over dim=1, then linear classifier.

    x1:        (B, L, D) float32 or bfloat16
    w_prepped: (D, O_pad) from prepare_predictor_params
    b_prepped: (1, O_pad)
    returns    (B, out_features) float32
    """
    B, L, D = x1.shape
    o_pad = w_prepped.shape[1]

    if vmem_limit_bytes is None:
        vmem_limit_bytes = _default_vmem_limit()

    if pool == "softmax_mean":
        # mean over L of softmax along L == 1/L exactly: no x1 read needed.
        return _constant_pool_forward(B, w_prepped, b_prepped, out_features,
                                      vmem_limit_bytes)

    if pool not in _SUM_POOLS + ("max", "softmax"):
        raise ValueError(f"unsupported pool: {pool!r}")

    itemsize = jnp.dtype(x1.dtype).itemsize
    align = max(8, 32 // itemsize)          # sublane tile: 8 (f32) / 16 (bf16)

    if x_block_bytes is None:
        # ~1/8 of the VMEM budget per x buffer (double-buffered), 2..8 MiB;
        # larger tiles amortize the ~0.35us per-grid-step overhead.
        x_block_bytes = int(min(8 * _MiB, max(2 * _MiB, vmem_limit_bytes // 8)))

    tb_cap = max(8, x_block_bytes // max(1, align * D * itemsize))
    TB = _pick_batch_tile(B, min(128, tb_cap))

    tl_cap = max(align, x_block_bytes // max(1, TB * D * itemsize))
    TL, l_pad = _pick_seq_tile(L, tl_cap, align)
    if l_pad:
        # Pad L so the grid divides exactly (neutral pad values per pool).
        pad_val = 0.0 if pool in _SUM_POOLS else float(jnp.finfo(x1.dtype).min)
        x1 = jnp.pad(x1, ((0, 0), (0, l_pad), (0, 0)), constant_values=pad_val)
    Lp = L + l_pad
    grid = (B // TB, Lp // TL)

    scratch = [pltpu.VMEM((TB, 8, D), jnp.float32)]           # per-slot partials
    if pool == "softmax":
        scratch.append(pltpu.VMEM((TB, 8, D), jnp.float32))   # per-slot running max

    kernel = functools.partial(_predictor_kernel, pool=pool)

    def build(single_buffer_params):
        # Weight / bias have constant index maps; a second pipeline buffer for
        # them is pure VMEM waste -> request single-buffering when supported.
        pkw = {"pipeline_mode": pl.Buffered(1)} if single_buffer_params else {}
        return pl.pallas_call(
            kernel,
            out_shape=jax.ShapeDtypeStruct((B, o_pad), jnp.float32),
            grid_spec=pltpu.PrefetchScalarGridSpec(
                num_scalar_prefetch=0,
                grid=grid,
                in_specs=[
                    pl.BlockSpec((TB, TL, D), lambda b, l: (b, l, 0)),
                    pl.BlockSpec((D, o_pad), lambda b, l: (0, 0), **pkw),
                    pl.BlockSpec((1, o_pad), lambda b, l: (0, 0), **pkw),
                ],
                out_specs=pl.BlockSpec((TB, o_pad), lambda b, l: (b, 0)),
                scratch_shapes=scratch,
            ),
            compiler_params=pltpu.CompilerParams(
                # batch tiles independent -> megacore-parallel on v7x;
                # L is the streamed reduction axis -> arbitrary (and last).
                dimension_semantics=("parallel", "arbitrary"),
                vmem_limit_bytes=vmem_limit_bytes,
            ),
        )

    try:
        out_padded = jax.block_until_ready(build(True)(x1, w_prepped, b_prepped))
    except Exception:
        # Fallback if this JAX build rejects pipeline_mode=Buffered(1) on a
        # top-level pallas_call BlockSpec.
        out_padded = build(False)(x1, w_prepped, b_prepped)

    return out_padded[:, :out_features]


def _init_linear_params(key, in_features, out_features):
    """Deterministic init mimicking nn.Linear defaults (kaiming uniform)."""
    kw, kb = jax.random.split(key)
    bound = 1.0 / math.sqrt(in_features)
    weight = jax.random.uniform(
        kw, (out_features, in_features), jnp.float32, -bound, bound)
    bias = jax.random.uniform(kb, (out_features,), jnp.float32, -bound, bound)
    return weight, bias


# TODO(synk): use='ctx' (plain linear on x2), use='both' (concat x1 with the
# broadcast context then pool over 2*D) and the pool=None direct-linear path
# are not implemented in-kernel; this covers the default use='seq'.
# TODO(synk): for D < 128, packing 128//D sequence positions into the lane dim
# (and optional bf16 exp for softmax on v6e/v7x) would further raise VALU/MXU
# utilization on v7x; skipped here to keep layouts simple and numerics exact.

if __name__ == "__main__":
    # Small shapes consistent with the module's forward: x1 is (B, L, D).
    B, L, D = 2, 16, 32
    out_features = 16

    key = jax.random.PRNGKey(0)
    kx, kp, kx2 = jax.random.split(key, 3)
    x1 = jax.random.normal(kx, (B, L, D), jnp.float32)
    weight, bias = _init_linear_params(kp, D, out_features)

    def ref_forward(x, pool):
        if pool in ("mean", "adaptive_avg_pool"):
            pooled = jnp.mean(x, axis=1)
        elif pool == "sum":
            pooled = jnp.sum(x, axis=1)
        elif pool == "max":
            pooled = jnp.max(x, axis=1)
        elif pool == "softmax":
            pooled = jnp.max(jax.nn.softmax(x, axis=1), axis=1)
        elif pool == "softmax_mean":
            pooled = jnp.mean(jax.nn.softmax(x, axis=1), axis=1)
        return pooled @ weight.T + bias

    def check(x, pool, **kw):
        w_p, b_p, o = prepare_predictor_params(weight, bias, x.shape[1], pool=pool)
        out = jax.block_until_ready(
            predictor_forward(x, w_p, b_p, o, pool=pool, **kw))
        expect = ref_forward(x, pool)
        assert out.shape == expect.shape, (pool, out.shape, expect.shape)
        assert jnp.allclose(out, expect, atol=1e-4, rtol=1e-4), f"{pool} mismatch"
        return out

    # Default module config: pool='mean', use='seq' (single L tile).
    check(x1, "mean")

    # Force a 2-step streamed L reduction with a tiny tile budget
    # (exercises the pl.when init / accumulate / finalize path) for all pools.
    small = B * 8 * D * 4
    for p in ("mean", "sum", "max", "adaptive_avg_pool", "softmax", "softmax_mean"):
        check(x1, p, x_block_bytes=small)

    # Awkward L (not a multiple of 8) exercises the padded-tail path.
    x_odd = jax.random.normal(kx2, (B, 13, D), jnp.float32)
    for p in ("mean", "max", "softmax"):
        check(x_odd, p)

    print("KERNEL_OK")
</pallas_src>

<mosaic_0001>
module attributes {stable_mosaic.version = 11 : i64} {
  func.func @_predictor_kernel(%arg0: i32, %arg1: i32, %arg2: memref<2x16x32xf32, #tpu.memory_space<vmem>>, %arg3: memref<32x128xf32, #tpu.memory_space<vmem>>, %arg4: memref<1x128xf32, #tpu.memory_space<vmem>>, %arg5: memref<2x128xf32, #tpu.memory_space<vmem>>, %arg6: memref<2x8x32xf32, #tpu.memory_space<vmem>>) attributes {dimension_semantics = [#tpu.dimension_semantics<parallel>, #tpu.dimension_semantics<arbitrary>], iteration_bounds = array<i64: 1, 1>, scalar_prefetch = 0 : i64, scratch_operands = 1 : i64, tpu.core_type = #tpu.core_type<tc>, window_params = [{transform_indices = @transform_0, window_bounds = array<i64: 2, 16, 32>}, {pipeline_mode = #tpu.pipeline_mode<synchronous>, transform_indices = @transform_1, window_bounds = array<i64: 32, 128>}, {pipeline_mode = #tpu.pipeline_mode<synchronous>, transform_indices = @transform_2, window_bounds = array<i64: 1, 128>}, {transform_indices = @transform_3, window_bounds = array<i64: 2, 128>}]} {
    %c0_i32 = arith.constant 0 : i32
    %0 = arith.cmpi eq, %arg1, %c0_i32 : i32
    %1 = arith.extui %0 : i1 to i32
    %c0_i32_0 = arith.constant 0 : i32
    %2 = arith.cmpi ne, %1, %c0_i32_0 : i32
    scf.if %2 {
      %cst_11 = arith.constant 0.000000e+00 : f32
      %12 = vector.broadcast %cst_11 : f32 to vector<2x8x32xf32>
      %c0_12 = arith.constant 0 : index
      %c0_13 = arith.constant 0 : index
      %c0_14 = arith.constant 0 : index
      %13 = vector.load %arg6[%c0_12, %c0_13, %c0_14] : memref<2x8x32xf32, #tpu.memory_space<vmem>>, vector<2x8x32xf32>
      tpu.vector_store %arg6[%c0_12, %c0_13, %c0_14], %12 {strides = array<i32>} : memref<2x8x32xf32, #tpu.memory_space<vmem>>, vector<2x8x32xf32>,
    } else {
    }
    %c0 = arith.constant 0 : index
    %c0_1 = arith.constant 0 : index
    %c0_2 = arith.constant 0 : index
    %3 = vector.load %arg2[%c0, %c0_1, %c0_2] : memref<2x16x32xf32, #tpu.memory_space<vmem>>, vector<2x16x32xf32>
    %4 = vector.shape_cast %3 : vector<2x16x32xf32> to vector<2x2x8x32xf32>
    %c0_3 = arith.constant 0 : index
    %c0_4 = arith.constant 0 : index
    %c0_5 = arith.constant 0 : index
    %5 = vector.load %arg6[%c0_3, %c0_4, %c0_5] : memref<2x8x32xf32, #tpu.memory_space<vmem>>, vector<2x8x32xf32>
    %cst = arith.constant dense<0.000000e+00> : vector<2x8x32xf32>
    %6 = vector.multi_reduction <add>, %4, %cst [1] : vector<2x2x8x32xf32> to vector<2x8x32xf32>
    %7 = arith.addf %5, %6 : vector<2x8x32xf32>
    %c0_6 = arith.constant 0 : index
    %c0_7 = arith.constant 0 : index
    %c0_8 = arith.constant 0 : index
    %8 = vector.load %arg6[%c0_6, %c0_7, %c0_8] : memref<2x8x32xf32, #tpu.memory_space<vmem>>, vector<2x8x32xf32>
    tpu.vector_store %arg6[%c0_6, %c0_7, %c0_8], %7 {strides = array<i32>} : memref<2x8x32xf32, #tpu.memory_space<vmem>>, vector<2x8x32xf32>,
    %c0_i32_9 = arith.constant 0 : i32
    %9 = arith.cmpi eq, %arg1, %c0_i32_9 : i32
    %10 = arith.extui %9 : i1 to i32
    %c0_i32_10 = arith.constant 0 : i32
    %11 = arith.cmpi ne, %10, %c0_i32_10 : i32
    scf.if %11 {
      %c0_11 = arith.constant 0 : index
      %c0_12 = arith.constant 0 : index
      %c0_13 = arith.constant 0 : index
      %12 = vector.load %arg6[%c0_11, %c0_12, %c0_13] : memref<2x8x32xf32, #tpu.memory_space<vmem>>, vector<2x8x32xf32>
      %cst_14 = arith.constant dense<0.000000e+00> : vector<2x32xf32>
      %13 = vector.multi_reduction <add>, %12, %cst_14 [1] : vector<2x8x32xf32> to vector<2x32xf32>
      %c0_15 = arith.constant 0 : index
      %c0_16 = arith.constant 0 : index
      %14 = vector.load %arg3[%c0_15, %c0_16] : memref<32x128xf32, #tpu.memory_space<vmem>>, vector<32x128xf32>
      %cst_17 = arith.constant dense<0.000000e+00> : vector<2x128xf32>
      %15 = tpu.matmul %13, %14, %cst_17 {dimension_numbers = #tpu.dot_dimension_numbers<[1], [0], [0], [1], [0, 0, 1, 1], [], []>} : vector<2x32xf32>, vector<32x128xf32>, vector<2x128xf32> -> vector<2x128xf32>
      %c0_18 = arith.constant 0 : index
      %c0_19 = arith.constant 0 : index
      %16 = vector.load %arg4[%c0_18, %c0_19] : memref<1x128xf32, #tpu.memory_space<vmem>>, vector<1x128xf32>
      %17 = vector.broadcast %16 : vector<1x128xf32> to vector<2x128xf32>
      %18 = arith.addf %15, %17 : vector<2x128xf32>
      %c0_20 = arith.constant 0 : index
      %c0_21 = arith.constant 0 : index
      %19 = vector.load %arg5[%c0_20, %c0_21] : memref<2x128xf32, #tpu.memory_space<vmem>>, vector<2x128xf32>
      tpu.vector_store %arg5[%c0_20, %c0_21], %18 {strides = array<i32>} : memref<2x128xf32, #tpu.memory_space<vmem>>, vector<2x128xf32>,
    } else {
    }
    return
  }
  func.func @transform_0(%arg0: i32, %arg1: i32) -> (i32, i32, i32) {
    %c0_i32 = arith.constant 0 : i32
    %c0_i32_0 = arith.constant 0 : i32
    return %arg0, %arg1, %c0_i32 : i32, i32, i32
  }
  func.func @transform_1(%arg0: i32, %arg1: i32) -> (i32, i32) {
    %c0_i32 = arith.constant 0 : i32
    %c0_i32_0 = arith.constant 0 : i32
    %c0_i32_1 = arith.constant 0 : i32
    return %c0_i32, %c0_i32_0 : i32, i32
  }
  func.func @transform_2(%arg0: i32, %arg1: i32) -> (i32, i32) {
    %c0_i32 = arith.constant 0 : i32
    %c0_i32_0 = arith.constant 0 : i32
    %c0_i32_1 = arith.constant 0 : i32
    return %c0_i32, %c0_i32_0 : i32, i32
  }
  func.func @transform_3(%arg0: i32, %arg1: i32) -> (i32, i32) {
    %c0_i32 = arith.constant 0 : i32
    %c0_i32_0 = arith.constant 0 : i32
    return %arg0, %c0_i32 : i32, i32
  }
}

module attributes {stable_mosaic.version = 11 : i64} {
  func.func @_predictor_kernel(%arg0: i32, %arg1: i32, %arg2: memref<2x16x32xf32, #tpu.memory_space<vmem>>, %arg3: memref<32x128xf32, #tpu.memory_space<vmem>>, %arg4: memref<1x128xf32, #tpu.memory_space<vmem>>, %arg5: memref<2x128xf32, #tpu.memory_space<vmem>>, %arg6: memref<2x8x32xf32, #tpu.memory_space<vmem>>) attributes {dimension_semantics = [#tpu.dimension_semantics<parallel>, #tpu.dimension_semantics<arbitrary>], iteration_bounds = array<i64: 1, 1>, scalar_prefetch = 0 : i64, scratch_operands = 1 : i64, tpu.core_type = #tpu.core_type<tc>, window_params = [{transform_indices = @transform_0, window_bounds = array<i64: 2, 16, 32>}, {pipeline_mode = #tpu.pipeline_mode<synchronous>, transform_indices = @transform_1, window_bounds = array<i64: 32, 128>}, {pipeline_mode = #tpu.pipeline_mode<synchronous>, transform_indices = @transform_2, window_bounds = array<i64: 1, 128>}, {transform_indices = @transform_3, window_bounds = array<i64: 2, 128>}]} {
    %c0_i32 = arith.constant 0 : i32
    %0 = arith.cmpi eq, %arg1, %c0_i32 : i32
    %1 = arith.extui %0 : i1 to i32
    %c0_i32_0 = arith.constant 0 : i32
    %2 = arith.cmpi ne, %1, %c0_i32_0 : i32
    scf.if %2 {
      %cst_11 = arith.constant 0.000000e+00 : f32
      %12 = vector.broadcast %cst_11 : f32 to vector<2x8x32xf32>
      %c0_12 = arith.constant 0 : index
      %c0_13 = arith.constant 0 : index
      %c0_14 = arith.constant 0 : index
      %13 = vector.load %arg6[%c0_12, %c0_13, %c0_14] : memref<2x8x32xf32, #tpu.memory_space<vmem>>, vector<2x8x32xf32>
      tpu.vector_store %arg6[%c0_12, %c0_13, %c0_14], %12 {strides = array<i32>} : memref<2x8x32xf32, #tpu.memory_space<vmem>>, vector<2x8x32xf32>,
    } else {
    }
    %c0 = arith.constant 0 : index
    %c0_1 = arith.constant 0 : index
    %c0_2 = arith.constant 0 : index
    %3 = vector.load %arg2[%c0, %c0_1, %c0_2] : memref<2x16x32xf32, #tpu.memory_space<vmem>>, vector<2x16x32xf32>
    %4 = vector.shape_cast %3 : vector<2x16x32xf32> to vector<2x2x8x32xf32>
    %c0_3 = arith.constant 0 : index
    %c0_4 = arith.constant 0 : index
    %c0_5 = arith.constant 0 : index
    %5 = vector.load %arg6[%c0_3, %c0_4, %c0_5] : memref<2x8x32xf32, #tpu.memory_space<vmem>>, vector<2x8x32xf32>
    %cst = arith.constant dense<0.000000e+00> : vector<2x8x32xf32>
    %6 = vector.multi_reduction <add>, %4, %cst [1] : vector<2x2x8x32xf32> to vector<2x8x32xf32>
    %7 = arith.addf %5, %6 : vector<2x8x32xf32>
    %c0_6 = arith.constant 0 : index
    %c0_7 = arith.constant 0 : index
    %c0_8 = arith.constant 0 : index
    %8 = vector.load %arg6[%c0_6, %c0_7, %c0_8] : memref<2x8x32xf32, #tpu.memory_space<vmem>>, vector<2x8x32xf32>
    tpu.vector_store %arg6[%c0_6, %c0_7, %c0_8], %7 {strides = array<i32>} : memref<2x8x32xf32, #tpu.memory_space<vmem>>, vector<2x8x32xf32>,
    %c0_i32_9 = arith.constant 0 : i32
    %9 = arith.cmpi eq, %arg1, %c0_i32_9 : i32
    %10 = arith.extui %9 : i1 to i32
    %c0_i32_10 = arith.constant 0 : i32
    %11 = arith.cmpi ne, %10, %c0_i32_10 : i32
    scf.if %11 {
      %c0_11 = arith.constant 0 : index
      %c0_12 = arith.constant 0 : index
      %c0_13 = arith.constant 0 : index
      %12 = vector.load %arg6[%c0_11, %c0_12, %c0_13] : memref<2x8x32xf32, #tpu.memory_space<vmem>>, vector<2x8x32xf32>
      %cst_14 = arith.constant dense<0.000000e+00> : vector<2x32xf32>
      %13 = vector.multi_reduction <add>, %12, %cst_14 [1] : vector<2x8x32xf32> to vector<2x32xf32>
      %c0_15 = arith.constant 0 : index
      %c0_16 = arith.constant 0 : index
      %14 = vector.load %arg3[%c0_15, %c0_16] : memref<32x128xf32, #tpu.memory_space<vmem>>, vector<32x128xf32>
      %cst_17 = arith.constant dense<0.000000e+00> : vector<2x128xf32>
      %15 = tpu.matmul %13, %14, %cst_17 {dimension_numbers = #tpu.dot_dimension_numbers<[1], [0], [0], [1], [0, 0, 1, 1], [], []>} : vector<2x32xf32>, vector<32x128xf32>, vector<2x128xf32> -> vector<2x128xf32>
      %c0_18 = arith.constant 0 : index
      %c0_19 = arith.constant 0 : index
      %16 = vector.load %arg4[%c0_18, %c0_19] : memref<1x128xf32, #tpu.memory_space<vmem>>, vector<1x128xf32>
      %17 = vector.broadcast %16 : vector<1x128xf32> to vector<2x128xf32>
      %18 = arith.addf %15, %17 : vector<2x128xf32>
      %c0_20 = arith.constant 0 : index
      %c0_21 = arith.constant 0 : index
      %19 = vector.load %arg5[%c0_20, %c0_21] : memref<2x128xf32, #tpu.memory_space<vmem>>, vector<2x128xf32>
      tpu.vector_store %arg5[%c0_20, %c0_21], %18 {strides = array<i32>} : memref<2x128xf32, #tpu.memory_space<vmem>>, vector<2x128xf32>,
    } else {
    }
    return
  }
  func.func @transform_0(%arg0: i32, %arg1: i32) -> (i32, i32, i32) {
    %c0_i32 = arith.constant 0 : i32
    %c0_i32_0 = arith.constant 0 : i32
    return %arg0, %arg1, %c0_i32 : i32, i32, i32
  }
  func.func @transform_1(%arg0: i32, %arg1: i32) -> (i32, i32) {
    %c0_i32 = arith.constant 0 : i32
    %c0_i32_0 = arith.constant 0 : i32
    %c0_i32_1 = arith.constant 0 : i32
    return %c0_i32, %c0_i32_0 : i32, i32
  }
  func.func @transform_2(%arg0: i32, %arg1: i32) -> (i32, i32) {
    %c0_i32 = arith.constant 0 : i32
    %c0_i32_0 = arith.constant 0 : i32
    %c0_i32_1 = arith.constant 0 : i32
    return %c0_i32, %c0_i32_0 : i32, i32
  }
  func.func @transform_3(%arg0: i32, %arg1: i32) -> (i32, i32) {
    %c0_i32 = arith.constant 0 : i32
    %c0_i32_0 = arith.constant 0 : i32
    return %arg0, %c0_i32 : i32, i32
  }
}

</mosaic_0001>

<llo_original>
// kernel: tpu_custom_call.1
$region0: #{tpu_custom_call.1}
  #allocation0 [shape = 'u32[]', space=smem, size = 0x4, offset = 0x4, fixed_abs, tag = 'smem constant byte address 0x4 - core index']
  #allocation1 [shape = 'u32[144,128]{1,0:T(1,128)}', space=vmem, size = 0x12000, scoped, tag = 'internal scratch']
  #allocation2 [shape = 'f32[2,8,32]{2,1,0:T(8,128)}', space=vmem, size = 0x2000, scoped, tag = 'scratch operand']
  %s0 = inlined_call_operand.hbm [shape: f32[2,16,32], index: 0, kind: input, shape index: {}]
  %s1 = inlined_call_operand.hbm [shape: f32[32,128], index: 1, kind: input, shape index: {}]
  %s2 = inlined_call_operand.vmem [shape: f32[1,128], index: 2, kind: input, shape index: {}]
  %s3 = inlined_call_operand.hbm [shape: f32[2,128], index: 3, kind: output, shape index: {}]
  %s4 = sld [smem:[#allocation0]]
  $region38: #{tpu_custom_call.1} parent=0
    _
  %s6 = ssub.s32 1, %s4
  %s7 = scalar_select 0, %s6, %s4
  $region1: #{tpu_custom_call.1} parent=0
    #allocation3 [shape = 'u8[16384]{0}', space=vmem, size = 0x4000, scoped, tag = 'input window, operand 0, single buffered']
    #allocation4 [shape = 's32[1]{0}', space=sflag, size = 0x4, scoped, tag = 'scoped memory for tpu_custom_call.1']
    #allocation5 [shape = 's32[1]{0}', space=sflag, size = 0x4, scoped, tag = 'scoped memory for tpu_custom_call.1']
    #allocation6 [shape = 'u8[16384]{0}', space=vmem, size = 0x4000, scoped, tag = 'input window, operand 1, single buffered']
    #allocation7 [shape = 's32[1]{0}', space=sflag, size = 0x4, scoped, tag = 'scoped memory for tpu_custom_call.1']
    #allocation8 [shape = 'u8[1024]{0}', space=vmem, size = 0x400, scoped, tag = 'output window, operand 0, single buffered']
    %8 = vsyncpa [#allocation4], 0
    %9 = vsyncpa [#allocation7], 0
    %10 = vsyncpa [#allocation5], 0
    // Predicated region
    $region2: #{tpu_custom_call.1} parent=1 // pred_check
      _
    $region3: #{tpu_custom_call.1} parent=1 // pred_check_branch
      %12 = sbr.rel (0) target = $region5
    $region4: #{tpu_custom_call.1} parent=1 // pred_region
      %s14 = ssub.s32 512, 512
      %15 = vsyncadd [#allocation4], %s14
      %s16 = sshll.u32 [#allocation3], 4
      %s17 = int_to_ptr.vmem [resolvable:$true] %s16
      %22 = dma.hbm_to_vmem [thread:$0]  %s0, 512, %s17, [#allocation4], 128, 128, 8
    $region5: #{tpu_custom_call.1} parent=1 // pred_fallthru
      _
    // Predicated region
    $region6: #{tpu_custom_call.1} parent=1 // pred_check
      _
    $region7: #{tpu_custom_call.1} parent=1 // pred_check_branch
      %24 = sbr.rel (0) target = $region9
    $region8: #{tpu_custom_call.1} parent=1 // pred_region
      %s26 = ssub.s32 512, 512
      %27 = vsyncadd [#allocation7], %s26
      %s28 = sshll.u32 [#allocation6], 4
      %s29 = int_to_ptr.vmem [resolvable:$true] %s28
      %34 = dma.hbm_to_vmem [thread:$0]  %s1, 512, %s29, [#allocation7], 128, 128, 8
    $region9: #{tpu_custom_call.1} parent=1 // pred_fallthru
      _
    // Predicated region
    $region10: #{tpu_custom_call.1} parent=1 // pred_check
      _
    $region11: #{tpu_custom_call.1} parent=1 // pred_check_branch
      %36 = sbr.rel (0) target = $region13
    $region12: #{tpu_custom_call.1} parent=1 // pred_region
      _
    $region13: #{tpu_custom_call.1} parent=1 // pred_fallthru
      _
    // Predicated region
    $region14: #{tpu_custom_call.1} parent=1 // pred_check
      _
    $region15: #{tpu_custom_call.1} parent=1 // pred_check_branch
      %38 = sbr.rel (0) target = $region17
    $region16: #{tpu_custom_call.1} parent=1 // pred_region
      %39 = dma.done [#allocation4], 512
    $region17: #{tpu_custom_call.1} parent=1 // pred_fallthru
      _
    // Predicated region
    $region18: #{tpu_custom_call.1} parent=1 // pred_check
      _
    $region19: #{tpu_custom_call.1} parent=1 // pred_check_branch
      %41 = sbr.rel (0) target = $region21
    $region20: #{tpu_custom_call.1} parent=1 // pred_region
      %42 = dma.done [#allocation7], 512
    $region21: #{tpu_custom_call.1} parent=1 // pred_fallthru
      _
    %p43 = scmp.eq.s32.totalorder 0, 0
    // Predicated region
    $region22: #{tpu_custom_call.1} parent=1 // pred_check
      %p44 = pneg %p43
    $region23: #{tpu_custom_call.1} parent=1 // pred_check_branch
      %46 = sbr.rel (%p44) target = $region25
    $region24: #{tpu_custom_call.1} parent=1 // pred_region
      %vm47 = vcmask 261120
      %48 = vst.msk [vmem:[#allocation2] sm:$0xff] %vm47, 0.0
      %49 = vst.msk [vmem:[#allocation2 + $0x8] sm:$0xff] %vm47, 0.0
    $region25: #{tpu_custom_call.1} parent=1 // pred_fallthru
      _
    %v50 = vld [vmem:[#allocation3] sm:$0xff]
    %v51 = vld [vmem:[#allocation3 + $0x8] sm:$0xff]
    %v52 = vld [vmem:[#allocation3 + $0x10] sm:$0xff]
    %v53 = vld [vmem:[#allocation3 + $0x18] sm:$0xff]
    %v54 = vld [vmem:[#allocation2] sm:$0xff]
    %v55 = vld [vmem:[#allocation2 + $0x8] sm:$0xff]
    %vm56 = vcmask 261120
    %v57 = vsel %vm56, %v50, 0.0
    %v58 = vsel %vm56, %v51, 0.0
    %v59 = vadd.f32 %v57, %v58
    %v60 = vsel %vm56, %v52, 0.0
    %v61 = vsel %vm56, %v53, 0.0
    %v62 = vadd.f32 %v60, %v61
    %v63 = vadd.f32 %v54, %v59
    %v64 = vadd.f32 %v55, %v62
    %65 = vst.msk [vmem:[#allocation2] sm:$0xff] %vm56, %v63
    %66 = vst.msk [vmem:[#allocation2 + $0x8] sm:$0xff] %vm56, %v64
    // Predicated region
    $region26: #{tpu_custom_call.1} parent=1 // pred_check
      %p67 = pneg %p43
    $region27: #{tpu_custom_call.1} parent=1 // pred_check_branch
      %69 = sbr.rel (%p67) target = $region29
    $region28: #{tpu_custom_call.1} parent=1 // pred_region
      %v70 = vld [vmem:[#allocation2] sm:$0xff]
      %v71 = vld [vmem:[#allocation2 + $0x8] sm:$0xff]
      %v72 = vsel %vm56, %v70, 0.0
      %v73 = vrot.slane %v72, 4
      %v74 = vadd.f32 %v72, %v73
      %v75 = vrot.slane %v74, 2
      %v76 = vadd.f32 %v74, %v75
      %v77 = vrot.slane %v76, 1
      %v78 = vadd.f32 %v76, %v77
      %v79 = vsel %vm56, %v71, 0.0
      %v80 = vrot.slane %v79, 4
      %v81 = vadd.f32 %v79, %v80
      %v82 = vrot.slane %v81, 2
      %v83 = vadd.f32 %v81, %v82
      %v84 = vrot.slane %v83, 1
      %v85 = vadd.f32 %v83, %v84
      %v86 = vld [vmem:[#allocation6] sm:$0xff]
      %v87 = vld [vmem:[#allocation6 + $0x8] sm:$0xff]
      %v88 = vld [vmem:[#allocation6 + $0x10] sm:$0xff]
      %v89 = vld [vmem:[#allocation6 + $0x18] sm:$0xff]
      %v90 = vld [vmem:[%s2] sm:$0x1]
      %v92 = vlaneseq
      %v93 = vshrl.u32 %v92, 7
      %v94 = vsub.s32 0, %v93
      %v95 = vrot.slane %v90, %v94
      %vm99 = vcmask 1041409
      %v100 = vsel %vm99, %v85, %v78
      %v101 = vsel %vm56, %v100, 0
      %103 = vmatprep.subr.mxu0 0.0
      %104 = vmatpush1.msra.mxu0 0.0
      %105 = vmatprep.subr.mxu0 0.0
      %106 = vmatpush1.msra.mxu0 0.0
      %107 = vmatprep.subr.mxu0 0.0
      %108 = vmatpush1.msra.mxu0 0.0
      %109 = vmatprep.subr.mxu0 0.0
      %110 = vmatpush1.msra.mxu0 0.0
      %111 = vmatprep.subr.mxu0 0.0
      %112 = vmatpush1.msra.mxu0 0.0
      %113 = vmatprep.subr.mxu0 0.0
      %114 = vmatpush1.msra.mxu0 0.0
      %115 = vmatprep.subr.mxu0 0.0
      %116 = vmatpush1.msra.mxu0 0.0
      %117 = vmatprep.subr.mxu0 0.0
      %118 = vmatpush1.msra.mxu0 0.0
      %119 = vmatprep.subr.mxu0 0.0
      %120 = vmatpush1.msra.mxu0 0.0
      %121 = vmatprep.subr.mxu0 0.0
      %122 = vmatpush1.msra.mxu0 0.0
      %123 = vmatprep.subr.mxu0 0.0
      %124 = vmatpush1.msra.mxu0 0.0
      %125 = vmatprep.subr.mxu0 0.0
      %126 = vmatpush1.msra.mxu0 0.0
      %127 = vmatprep.subr.mxu0 0.0
      %128 = vmatpush1.msra.mxu0 %v89
      %129 = vmatprep.subr.mxu0 0.0
      %130 = vmatpush1.msra.mxu0 %v88
      %131 = vmatprep.subr.mxu0 0.0
      %132 = vmatpush1.msra.mxu0 %v87
      %133 = vmatprep.subr.mxu0 0.0
      %134 = vmatpush1.msra.mxu0 %v86
      %135 = vmatprep.subr.mxu0 0.0
      %136 = vmatpush2.msra.mxu0 0.0
      %137 = vmatprep.subr.mxu0 0.0
      %138 = vmatpush2.msra.mxu0 0.0
      %139 = vmatprep.subr.mxu0 0.0
      %140 = vmatpush2.msra.mxu0 0.0
      %141 = vmatprep.subr.mxu0 0.0
      %142 = vmatpush2.msra.mxu0 0.0
      %143 = vmatprep.subr.mxu0 0.0
      %144 = vmatpush2.msra.mxu0 0.0
      %145 = vmatprep.subr.mxu0 0.0
      %146 = vmatpush2.msra.mxu0 0.0
      %147 = vmatprep.subr.mxu0 0.0
      %148 = vmatpush2.msra.mxu0 0.0
      %149 = vmatprep.subr.mxu0 0.0
      %150 = vmatpush2.msra.mxu0 0.0
      %151 = vmatprep.subr.mxu0 0.0
      %152 = vmatpush2.msra.mxu0 0.0
      %153 = vmatprep.subr.mxu0 0.0
      %154 = vmatpush2.msra.mxu0 0.0
      %155 = vmatprep.subr.mxu0 0.0
      %156 = vmatpush2.msra.mxu0 0.0
      %157 = vmatprep.subr.mxu0 0.0
      %158 = vmatpush2.msra.mxu0 0.0
      %159 = vmatprep.subr.mxu0 0.0
      %160 = vmatpush2.msra.mxu0 0.0
      %161 = vmatprep.subr.mxu0 0.0
      %162 = vmatpush2.msra.mxu0 0.0
      %163 = vmatprep.subr.mxu0 0.0
      %164 = vmatpush2.msra.mxu0 0.0
      %165 = vmatprep.subr.mxu0 0.0
      %166 = vmatpush2.msra.mxu0 0.0
      %167 = vmatprep.mubr.f32.mxu0 0.0
      %168 = vmatmul.mubr.f32.gmra.mxu0 %v101
      %v169 = vpop.f32.mrf.mxu0
      %v170 = vadd.f32 %v95, %v169
      %v171 = vpop.f32.mrf.mxu0
      %172 = vdwg.mxu0
      %173 = vst [vmem:[#allocation8] sm:$0x3] %v170
    $region29: #{tpu_custom_call.1} parent=1 // pred_fallthru
      _
    // Predicated region
    $region30: #{tpu_custom_call.1} parent=1 // pred_check
      _
    $region31: #{tpu_custom_call.1} parent=1 // pred_check_branch
      %175 = sbr.rel (0) target = $region33
    $region32: #{tpu_custom_call.1} parent=1 // pred_region
      %s177 = ssub.s32 32, 32
      %178 = vsyncadd [#allocation5], %s177
      %s180 = sshll.u32 [#allocation8], 4
      %s181 = int_to_ptr.vmem [resolvable:$true] %s180
      %183 = dma.vmem_to_hbm [thread:$0]  %s181, 32, %s3, [#allocation5]
    $region33: #{tpu_custom_call.1} parent=1 // pred_fallthru
      _
    // Predicated region
    $region34: #{tpu_custom_call.1} parent=1 // pred_check
      _
    $region35: #{tpu_custom_call.1} parent=1 // pred_check_branch
      %185 = sbr.rel (0) target = $region37
    $region36: #{tpu_custom_call.1} parent=1 // pred_region
      %186 = dma.done [#allocation5], 32
    $region37: #{tpu_custom_call.1} parent=1 // pred_fallthru
      _
    %187 = vsyncpa [#allocation4], 1
    %188 = vsyncpa [#allocation7], 1
    %189 = vsyncpa [#allocation5], 1

// kernel: tpu_custom_call.1
$region0: #{tpu_custom_call.1}
  #allocation0 [shape = 'u32[]', space=smem, size = 0x4, offset = 0x4, fixed_abs, tag = 'smem constant byte address 0x4 - core index']
  #allocation1 [shape = 'u32[144,128]{1,0:T(1,128)}', space=vmem, size = 0x12000, scoped, tag = 'internal scratch']
  #allocation2 [shape = 'f32[2,8,32]{2,1,0:T(8,128)}', space=vmem, size = 0x2000, scoped, tag = 'scratch operand']
  %s0 = inlined_call_operand.hbm [shape: f32[2,16,32], index: 0, kind: input, shape index: {}]
  %s1 = inlined_call_operand.hbm [shape: f32[32,128], index: 1, kind: input, shape index: {}]
  %s2 = inlined_call_operand.vmem [shape: f32[1,128], index: 2, kind: input, shape index: {}]
  %s3 = inlined_call_operand.hbm [shape: f32[2,128], index: 3, kind: output, shape index: {}]
  %s4 = sld [smem:[#allocation0]]
  $region38: #{tpu_custom_call.1} parent=0
    _
  %s6 = ssub.s32 1, %s4
  %s7 = scalar_select 0, %s6, %s4
  $region1: #{tpu_custom_call.1} parent=0
    #allocation3 [shape = 'u8[16384]{0}', space=vmem, size = 0x4000, scoped, tag = 'input window, operand 0, single buffered']
    #allocation4 [shape = 's32[1]{0}', space=sflag, size = 0x4, scoped, tag = 'scoped memory for tpu_custom_call.1']
    #allocation5 [shape = 's32[1]{0}', space=sflag, size = 0x4, scoped, tag = 'scoped memory for tpu_custom_call.1']
    #allocation6 [shape = 'u8[16384]{0}', space=vmem, size = 0x4000, scoped, tag = 'input window, operand 1, single buffered']
    #allocation7 [shape = 's32[1]{0}', space=sflag, size = 0x4, scoped, tag = 'scoped memory for tpu_custom_call.1']
    #allocation8 [shape = 'u8[1024]{0}', space=vmem, size = 0x400, scoped, tag = 'output window, operand 0, single buffered']
    %8 = vsyncpa [#allocation4], 0
    %9 = vsyncpa [#allocation7], 0
    %10 = vsyncpa [#allocation5], 0
    // Predicated region
    $region2: #{tpu_custom_call.1} parent=1 // pred_check
      _
    $region3: #{tpu_custom_call.1} parent=1 // pred_check_branch
      %12 = sbr.rel (0) target = $region5
    $region4: #{tpu_custom_call.1} parent=1 // pred_region
      %s14 = ssub.s32 512, 512
      %15 = vsyncadd [#allocation4], %s14
      %s16 = sshll.u32 [#allocation3], 4
      %s17 = int_to_ptr.vmem [resolvable:$true] %s16
      %22 = dma.hbm_to_vmem [thread:$0]  %s0, 512, %s17, [#allocation4], 128, 128, 8
    $region5: #{tpu_custom_call.1} parent=1 // pred_fallthru
      _
    // Predicated region
    $region6: #{tpu_custom_call.1} parent=1 // pred_check
      _
    $region7: #{tpu_custom_call.1} parent=1 // pred_check_branch
      %24 = sbr.rel (0) target = $region9
    $region8: #{tpu_custom_call.1} parent=1 // pred_region
      %s26 = ssub.s32 512, 512
      %27 = vsyncadd [#allocation7], %s26
      %s28 = sshll.u32 [#allocation6], 4
      %s29 = int_to_ptr.vmem [resolvable:$true] %s28
      %34 = dma.hbm_to_vmem [thread:$0]  %s1, 512, %s29, [#allocation7], 128, 128, 8
    $region9: #{tpu_custom_call.1} parent=1 // pred_fallthru
      _
    // Predicated region
    $region10: #{tpu_custom_call.1} parent=1 // pred_check
      _
    $region11: #{tpu_custom_call.1} parent=1 // pred_check_branch
      %36 = sbr.rel (0) target = $region13
    $region12: #{tpu_custom_call.1} parent=1 // pred_region
      _
    $region13: #{tpu_custom_call.1} parent=1 // pred_fallthru
      _
    // Predicated region
    $region14: #{tpu_custom_call.1} parent=1 // pred_check
      _
    $region15: #{tpu_custom_call.1} parent=1 // pred_check_branch
      %38 = sbr.rel (0) target = $region17
    $region16: #{tpu_custom_call.1} parent=1 // pred_region
      %39 = dma.done [#allocation4], 512
    $region17: #{tpu_custom_call.1} parent=1 // pred_fallthru
      _
    // Predicated region
    $region18: #{tpu_custom_call.1} parent=1 // pred_check
      _
    $region19: #{tpu_custom_call.1} parent=1 // pred_check_branch
      %41 = sbr.rel (0) target = $region21
    $region20: #{tpu_custom_call.1} parent=1 // pred_region
      %42 = dma.done [#allocation7], 512
    $region21: #{tpu_custom_call.1} parent=1 // pred_fallthru
      _
    %p43 = scmp.eq.s32.totalorder 0, 0
    // Predicated region
    $region22: #{tpu_custom_call.1} parent=1 // pred_check
      %p44 = pneg %p43
    $region23: #{tpu_custom_call.1} parent=1 // pred_check_branch
      %46 = sbr.rel (%p44) target = $region25
    $region24: #{tpu_custom_call.1} parent=1 // pred_region
      %vm47 = vcmask 261120
      %48 = vst.msk [vmem:[#allocation2] sm:$0xff] %vm47, 0.0
      %49 = vst.msk [vmem:[#allocation2 + $0x8] sm:$0xff] %vm47, 0.0
    $region25: #{tpu_custom_call.1} parent=1 // pred_fallthru
      _
    %v50 = vld [vmem:[#allocation3] sm:$0xff]
    %v51 = vld [vmem:[#allocation3 + $0x8] sm:$0xff]
    %v52 = vld [vmem:[#allocation3 + $0x10] sm:$0xff]
    %v53 = vld [vmem:[#allocation3 + $0x18] sm:$0xff]
    %v54 = vld [vmem:[#allocation2] sm:$0xff]
    %v55 = vld [vmem:[#allocation2 + $0x8] sm:$0xff]
    %vm56 = vcmask 261120
    %v57 = vsel %vm56, %v50, 0.0
    %v58 = vsel %vm56, %v51, 0.0
    %v59 = vadd.f32 %v57, %v58
    %v60 = vsel %vm56, %v52, 0.0
    %v61 = vsel %vm56, %v53, 0.0
    %v62 = vadd.f32 %v60, %v61
    %v63 = vadd.f32 %v54, %v59
    %v64 = vadd.f32 %v55, %v62
    %65 = vst.msk [vmem:[#allocation2] sm:$0xff] %vm56, %v63
    %66 = vst.msk [vmem:[#allocation2 + $0x8] sm:$0xff] %vm56, %v64
    // Predicated region
    $region26: #{tpu_custom_call.1} parent=1 // pred_check
      %p67 = pneg %p43
    $region27: #{tpu_custom_call.1} parent=1 // pred_check_branch
      %69 = sbr.rel (%p67) target = $region29
    $region28: #{tpu_custom_call.1} parent=1 // pred_region
      %v70 = vld [vmem:[#allocation2] sm:$0xff]
      %v71 = vld [vmem:[#allocation2 + $0x8] sm:$0xff]
      %v72 = vsel %vm56, %v70, 0.0
      %v73 = vrot.slane %v72, 4
      %v74 = vadd.f32 %v72, %v73
      %v75 = vrot.slane %v74, 2
      %v76 = vadd.f32 %v74, %v75
      %v77 = vrot.slane %v76, 1
      %v78 = vadd.f32 %v76, %v77
      %v79 = vsel %vm56, %v71, 0.0
      %v80 = vrot.slane %v79, 4
      %v81 = vadd.f32 %v79, %v80
      %v82 = vrot.slane %v81, 2
      %v83 = vadd.f32 %v81, %v82
      %v84 = vrot.slane %v83, 1
      %v85 = vadd.f32 %v83, %v84
      %v86 = vld [vmem:[#allocation6] sm:$0xff]
      %v87 = vld [vmem:[#allocation6 + $0x8] sm:$0xff]
      %v88 = vld [vmem:[#allocation6 + $0x10] sm:$0xff]
      %v89 = vld [vmem:[#allocation6 + $0x18] sm:$0xff]
      %v90 = vld [vmem:[%s2] sm:$0x1]
      %v92 = vlaneseq
      %v93 = vshrl.u32 %v92, 7
      %v94 = vsub.s32 0, %v93
      %v95 = vrot.slane %v90, %v94
      %vm99 = vcmask 1041409
      %v100 = vsel %vm99, %v85, %v78
      %v101 = vsel %vm56, %v100, 0
      %103 = vmatprep.subr.mxu0 0.0
      %104 = vmatpush1.msra.mxu0 0.0
      %105 = vmatprep.subr.mxu0 0.0
      %106 = vmatpush1.msra.mxu0 0.0
      %107 = vmatprep.subr.mxu0 0.0
      %108 = vmatpush1.msra.mxu0 0.0
      %109 = vmatprep.subr.mxu0 0.0
      %110 = vmatpush1.msra.mxu0 0.0
      %111 = vmatprep.subr.mxu0 0.0
      %112 = vmatpush1.msra.mxu0 0.0
      %113 = vmatprep.subr.mxu0 0.0
      %114 = vmatpush1.msra.mxu0 0.0
      %115 = vmatprep.subr.mxu0 0.0
      %116 = vmatpush1.msra.mxu0 0.0
      %117 = vmatprep.subr.mxu0 0.0
      %118 = vmatpush1.msra.mxu0 0.0
      %119 = vmatprep.subr.mxu0 0.0
      %120 = vmatpush1.msra.mxu0 0.0
      %121 = vmatprep.subr.mxu0 0.0
      %122 = vmatpush1.msra.mxu0 0.0
      %123 = vmatprep.subr.mxu0 0.0
      %124 = vmatpush1.msra.mxu0 0.0
      %125 = vmatprep.subr.mxu0 0.0
      %126 = vmatpush1.msra.mxu0 0.0
      %127 = vmatprep.subr.mxu0 0.0
      %128 = vmatpush1.msra.mxu0 %v89
      %129 = vmatprep.subr.mxu0 0.0
      %130 = vmatpush1.msra.mxu0 %v88
      %131 = vmatprep.subr.mxu0 0.0
      %132 = vmatpush1.msra.mxu0 %v87
      %133 = vmatprep.subr.mxu0 0.0
      %134 = vmatpush1.msra.mxu0 %v86
      %135 = vmatprep.subr.mxu0 0.0
      %136 = vmatpush2.msra.mxu0 0.0
      %137 = vmatprep.subr.mxu0 0.0
      %138 = vmatpush2.msra.mxu0 0.0
      %139 = vmatprep.subr.mxu0 0.0
      %140 = vmatpush2.msra.mxu0 0.0
      %141 = vmatprep.subr.mxu0 0.0
      %142 = vmatpush2.msra.mxu0 0.0
      %143 = vmatprep.subr.mxu0 0.0
      %144 = vmatpush2.msra.mxu0 0.0
      %145 = vmatprep.subr.mxu0 0.0
      %146 = vmatpush2.msra.mxu0 0.0
      %147 = vmatprep.subr.mxu0 0.0
      %148 = vmatpush2.msra.mxu0 0.0
      %149 = vmatprep.subr.mxu0 0.0
      %150 = vmatpush2.msra.mxu0 0.0
      %151 = vmatprep.subr.mxu0 0.0
      %152 = vmatpush2.msra.mxu0 0.0
      %153 = vmatprep.subr.mxu0 0.0
      %154 = vmatpush2.msra.mxu0 0.0
      %155 = vmatprep.subr.mxu0 0.0
      %156 = vmatpush2.msra.mxu0 0.0
      %157 = vmatprep.subr.mxu0 0.0
      %158 = vmatpush2.msra.mxu0 0.0
      %159 = vmatprep.subr.mxu0 0.0
      %160 = vmatpush2.msra.mxu0 0.0
      %161 = vmatprep.subr.mxu0 0.0
      %162 = vmatpush2.msra.mxu0 0.0
      %163 = vmatprep.subr.mxu0 0.0
      %164 = vmatpush2.msra.mxu0 0.0
      %165 = vmatprep.subr.mxu0 0.0
      %166 = vmatpush2.msra.mxu0 0.0
      %167 = vmatprep.mubr.f32.mxu0 0.0
      %168 = vmatmul.mubr.f32.gmra.mxu0 %v101
      %v169 = vpop.f32.mrf.mxu0
      %v170 = vadd.f32 %v95, %v169
      %v171 = vpop.f32.mrf.mxu0
      %172 = vdwg.mxu0
      %173 = vst [vmem:[#allocation8] sm:$0x3] %v170
    $region29: #{tpu_custom_call.1} parent=1 // pred_fallthru
      _
    // Predicated region
    $region30: #{tpu_custom_call.1} parent=1 // pred_check
      _
    $region31: #{tpu_custom_call.1} parent=1 // pred_check_branch
      %175 = sbr.rel (0) target = $region33
    $region32: #{tpu_custom_call.1} parent=1 // pred_region
      %s177 = ssub.s32 32, 32
      %178 = vsyncadd [#allocation5], %s177
      %s180 = sshll.u32 [#allocation8], 4
      %s181 = int_to_ptr.vmem [resolvable:$true] %s180
      %183 = dma.vmem_to_hbm [thread:$0]  %s181, 32, %s3, [#allocation5]
    $region33: #{tpu_custom_call.1} parent=1 // pred_fallthru
      _
    // Predicated region
    $region34: #{tpu_custom_call.1} parent=1 // pred_check
      _
    $region35: #{tpu_custom_call.1} parent=1 // pred_check_branch
      %185 = sbr.rel (0) target = $region37
    $region36: #{tpu_custom_call.1} parent=1 // pred_region
      %186 = dma.done [#allocation5], 32
    $region37: #{tpu_custom_call.1} parent=1 // pred_fallthru
      _
    %187 = vsyncpa [#allocation4], 1
    %188 = vsyncpa [#allocation7], 1
    %189 = vsyncpa [#allocation5], 1

</llo_original>
